<compile_context>
chip_gen: v6e
topology: v6e:2x2x1
jax: 0.10.0
libtpu: 0.0.40
codegen_flags: <defaults>
</compile_context>

<pallas_src>
import functools
import math

import jax
import jax.numpy as jnp
from jax.experimental import pallas as pl
from jax.experimental.pallas import tpu as pltpu


def _gelu(v):
    # exact formula from the torch GeLU module (tanh approximation)
    return 0.5 * v * (1.0 + jnp.tanh(v * 0.7978845608 * (1.0 + 0.044715 * v * v)))


def _round_up(x, m):
    return (x + m - 1) // m * m


def fusion_kernel(x_ref, a_ref, w1_ref, wy_ref, b1_ref, wf_ref, bf_ref, o_ref, *, hidden):
    H = hidden
    x = x_ref[...]                      # (tm, D) in compute dtype (bf16 or f32)
    a = a_ref[...]
    cdt = x.dtype

    # x * align: do the product in f32 on the VPU, cast back for the MXU.
    xa = (x.astype(jnp.float32) * a.astype(jnp.float32)).astype(cdt)

    # ---- layer 1: fusion1 applied three times (concat -> split matmuls) ----
    # one wide dot for the shared LHS x against [Wx | Wy] -> (tm, 2H)
    s1 = jnp.dot(x, w1_ref[...], preferred_element_type=jnp.float32)
    x_wx = s1[:, :H]
    x_wy = s1[:, H:]
    a_wy = jnp.dot(a, wy_ref[...], preferred_element_type=jnp.float32)
    m_wy = jnp.dot(xa, wy_ref[...], preferred_element_type=jnp.float32)

    b1 = b1_ref[...].astype(jnp.float32)
    h1 = _gelu(x_wx + a_wy + b1)           # gelu(cat([x, a])     @ W1.T + b1)
    h2 = _gelu(x_wx + x_wy - a_wy + b1)    # gelu(cat([x, x - a]) @ W1.T + b1)
    h3 = _gelu(x_wx + m_wy + b1)           # gelu(cat([x, x * a]) @ W1.T + b1)

    # ---- dropout == identity (eval mode) ----
    # ---- layer 2: single (tm, 3H) @ (3H, H) dot against stacked Wf.T ----
    h = jnp.concatenate([h1, h2, h3], axis=-1).astype(cdt)
    out = _gelu(jnp.dot(h, wf_ref[...], preferred_element_type=jnp.float32)
                + bf_ref[...].astype(jnp.float32))
    o_ref[...] = out.astype(o_ref.dtype)


def fusion_forward(x, align, params, *, tm=256, compute_dtype=jnp.bfloat16):
    """x, align: (B, S, D) -> (B, S, H)."""
    B, S, D = x.shape
    H = params["b1"].shape[0]
    M = B * S

    # sublane packing: 16 rows for 16-bit compute dtypes, 8 for f32
    sub = 16 if jnp.dtype(compute_dtype).itemsize == 2 else 8
    tm = _round_up(tm, sub)
    tm_eff = min(tm, _round_up(M, sub))       # don't over-tile tiny problems
    M_pad = _round_up(M, tm_eff)

    x2 = x.reshape(M, D).astype(compute_dtype)
    a2 = align.reshape(M, D).astype(compute_dtype)
    if M_pad != M:
        pad = ((0, M_pad - M), (0, 0))
        x2 = jnp.pad(x2, pad)
        a2 = jnp.pad(a2, pad)

    # pre-packed weights fed in compute dtype (bf16 halves VMEM residency)
    w1cat = params["w1cat"].astype(compute_dtype)   # (D, 2H)  = [Wx | Wy]
    wy = params["wy"].astype(compute_dtype)         # (D, H)
    wf = params["wf_t"].astype(compute_dtype)       # (3H, H)  = stacked Wf.T
    b1 = params["b1"].reshape(1, H).astype(jnp.float32)
    bf = params["bf"].reshape(1, H).astype(jnp.float32)

    # VMEM budget: weights (budget 2x in case Pallas double-buffers the
    # constant-index blocks) + double-buffered activation tiles + headroom.
    dt = jnp.dtype(compute_dtype).itemsize
    w_bytes = (D * 2 * H + D * H + 3 * H * H) * dt
    act_bytes = 2 * (2 * tm_eff * D * dt + tm_eff * H * x.dtype.itemsize)
    vmem_limit = int(max(32 << 20, min(2 * w_bytes + act_bytes + (8 << 20), 100 << 20)))

    kernel = functools.partial(fusion_kernel, hidden=H)
    out = pl.pallas_call(
        kernel,
        out_shape=jax.ShapeDtypeStruct((M_pad, H), x.dtype),
        grid_spec=pltpu.PrefetchScalarGridSpec(
            num_scalar_prefetch=0,
            grid=(M_pad // tm_eff,),
            in_specs=[
                pl.BlockSpec((tm_eff, D), lambda i: (i, 0)),   # x rows
                pl.BlockSpec((tm_eff, D), lambda i: (i, 0)),   # align rows
                pl.BlockSpec((D, 2 * H), lambda i: (0, 0)),    # [Wx | Wy]
                pl.BlockSpec((D, H), lambda i: (0, 0)),        # Wy
                pl.BlockSpec((1, H), lambda i: (0, 0)),        # b1
                pl.BlockSpec((3 * H, H), lambda i: (0, 0)),    # stacked Wf.T
                pl.BlockSpec((1, H), lambda i: (0, 0)),        # bf
            ],
            out_specs=pl.BlockSpec((tm_eff, H), lambda i: (i, 0)),
        ),
        compiler_params=pltpu.CompilerParams(
            dimension_semantics=("parallel",),
            vmem_limit_bytes=vmem_limit),
    )(x2, a2, w1cat, wy, b1, wf, bf)

    if M_pad != M:
        out = out[:M]
    return out.reshape(B, S, H)


def init_params(key, input_size, hidden_size):
    """Mirror torch init: normal(std=sqrt(2/in)) weights, zero biases, weight_norm."""
    D, H = input_size, hidden_size
    k1, k2 = jax.random.split(key)

    def weight_norm_eff(v):
        norm = jnp.linalg.norm(v, axis=1, keepdims=True)
        g = norm                      # weight_norm init: g = ||v|| per output row
        return g * v / norm

    v1 = jax.random.normal(k1, (H, 2 * D), jnp.float32) * math.sqrt(2.0 / (2 * D))
    w1 = weight_norm_eff(v1)          # (H, 2D), effective fusion1 weight
    b1 = jnp.zeros((H,), jnp.float32)

    vf = jax.random.normal(k2, (H, 3 * H), jnp.float32) * math.sqrt(2.0 / (3 * H))
    wf = weight_norm_eff(vf)          # (H, 3H), effective final fusion weight
    bf = jnp.zeros((H,), jnp.float32)

    wx = w1[:, :D].T                  # (D, H)
    wy = w1[:, D:].T                  # (D, H)
    # NOTE: fusion2 / fusion3 exist in the torch module but are unused by forward().
    return dict(
        w1=w1, wf=wf, b1=b1, bf=bf,
        w1cat=jnp.concatenate([wx, wy], axis=1),   # (D, 2H)
        wy=wy,
        wf_t=wf.T,                                 # (3H, H)
    )


def fusion_reference(x, align, params):
    """Pure-JAX f32 reference matching the torch forward literally (with concats)."""
    w1, b1, wf, bf = params["w1"], params["b1"], params["wf"], params["bf"]

    def lin1(z):
        return _gelu(z @ w1.T + b1)

    x1 = lin1(jnp.concatenate([x, align], axis=-1))
    x2 = lin1(jnp.concatenate([x, x - align], axis=-1))
    x3 = lin1(jnp.concatenate([x, x * align], axis=-1))
    h = jnp.concatenate([x1, x2, x3], axis=-1)
    return _gelu(h @ wf.T + bf)


if __name__ == "__main__":
    B, S, D, H = 2, 8, 32, 32          # batch, seq_len, input_size, hidden_size

    key = jax.random.PRNGKey(0)
    kx, ka, kp = jax.random.split(key, 3)
    x = jax.random.normal(kx, (B, S, D), jnp.float32)
    align = jax.random.normal(ka, (B, S, D), jnp.float32)
    params = init_params(kp, D, H)

    ref = jax.block_until_ready(fusion_reference(x, align, params))

    # f32-MXU path: tight structural correctness check
    out32 = jax.block_until_ready(
        fusion_forward(x, align, params, compute_dtype=jnp.float32))
    assert out32.shape == (B, S, H), out32.shape
    assert jnp.all(jnp.isfinite(out32))
    assert jnp.allclose(out32, ref, rtol=5e-2, atol=5e-2), \
        float(jnp.max(jnp.abs(out32 - ref)))

    # default bf16-MXU path (the performance path): looser numeric check
    out16 = jax.block_until_ready(fusion_forward(x, align, params))
    assert out16.shape == (B, S, H), out16.shape
    assert jnp.all(jnp.isfinite(out16))
    assert jnp.allclose(out16, ref, rtol=1.5e-1, atol=1.5e-1), \
        float(jnp.max(jnp.abs(out16 - ref)))

    print("KERNEL_OK")
</pallas_src>

<mosaic_0001>
module attributes {stable_mosaic.version = 11 : i64} {
  func.func @fusion_kernel(%arg0: i32, %arg1: memref<16x32xf32, #tpu.memory_space<vmem>>, %arg2: memref<16x32xf32, #tpu.memory_space<vmem>>, %arg3: memref<32x64xf32, #tpu.memory_space<vmem>>, %arg4: memref<32x32xf32, #tpu.memory_space<vmem>>, %arg5: memref<1x32xf32, #tpu.memory_space<vmem>>, %arg6: memref<96x32xf32, #tpu.memory_space<vmem>>, %arg7: memref<1x32xf32, #tpu.memory_space<vmem>>, %arg8: memref<16x32xf32, #tpu.memory_space<vmem>>) attributes {dimension_semantics = [#tpu.dimension_semantics<parallel>], iteration_bounds = array<i64: 1>, scalar_prefetch = 0 : i64, scratch_operands = 0 : i64, tpu.core_type = #tpu.core_type<tc>, window_params = [{transform_indices = @transform_0, window_bounds = array<i64: 16, 32>}, {transform_indices = @transform_1, window_bounds = array<i64: 16, 32>}, {pipeline_mode = #tpu.pipeline_mode<synchronous>, transform_indices = @transform_2, window_bounds = array<i64: 32, 64>}, {pipeline_mode = #tpu.pipeline_mode<synchronous>, transform_indices = @transform_3, window_bounds = array<i64: 32, 32>}, {pipeline_mode = #tpu.pipeline_mode<synchronous>, transform_indices = @transform_4, window_bounds = array<i64: 1, 32>}, {pipeline_mode = #tpu.pipeline_mode<synchronous>, transform_indices = @transform_5, window_bounds = array<i64: 96, 32>}, {pipeline_mode = #tpu.pipeline_mode<synchronous>, transform_indices = @transform_6, window_bounds = array<i64: 1, 32>}, {transform_indices = @transform_7, window_bounds = array<i64: 16, 32>}]} {
    %c0 = arith.constant 0 : index
    %c0_0 = arith.constant 0 : index
    %0 = vector.load %arg1[%c0, %c0_0] : memref<16x32xf32, #tpu.memory_space<vmem>>, vector<16x32xf32>
    %c0_1 = arith.constant 0 : index
    %c0_2 = arith.constant 0 : index
    %1 = vector.load %arg2[%c0_1, %c0_2] : memref<16x32xf32, #tpu.memory_space<vmem>>, vector<16x32xf32>
    %2 = arith.mulf %0, %1 : vector<16x32xf32>
    %c0_3 = arith.constant 0 : index
    %c0_4 = arith.constant 0 : index
    %3 = vector.load %arg3[%c0_3, %c0_4] : memref<32x64xf32, #tpu.memory_space<vmem>>, vector<32x64xf32>
    %cst = arith.constant dense<0.000000e+00> : vector<16x64xf32>
    %4 = tpu.matmul %0, %3, %cst {dimension_numbers = #tpu.dot_dimension_numbers<[1], [0], [0], [1], [0, 0, 1, 1], [], []>} : vector<16x32xf32>, vector<32x64xf32>, vector<16x64xf32> -> vector<16x64xf32>
    %5 = vector.extract_strided_slice %4 {offsets = [0, 0], sizes = [16, 32], strides = [1, 1]} : vector<16x64xf32> to vector<16x32xf32>
    %6 = vector.extract_strided_slice %4 {offsets = [0, 32], sizes = [16, 32], strides = [1, 1]} : vector<16x64xf32> to vector<16x32xf32>
    %c0_5 = arith.constant 0 : index
    %c0_6 = arith.constant 0 : index
    %7 = vector.load %arg4[%c0_5, %c0_6] : memref<32x32xf32, #tpu.memory_space<vmem>>, vector<32x32xf32>
    %cst_7 = arith.constant dense<0.000000e+00> : vector<16x32xf32>
    %8 = tpu.matmul %1, %7, %cst_7 {dimension_numbers = #tpu.dot_dimension_numbers<[1], [0], [0], [1], [0, 0, 1, 1], [], []>} : vector<16x32xf32>, vector<32x32xf32>, vector<16x32xf32> -> vector<16x32xf32>
    %c0_8 = arith.constant 0 : index
    %c0_9 = arith.constant 0 : index
    %9 = vector.load %arg4[%c0_8, %c0_9] : memref<32x32xf32, #tpu.memory_space<vmem>>, vector<32x32xf32>
    %cst_10 = arith.constant dense<0.000000e+00> : vector<16x32xf32>
    %10 = tpu.matmul %2, %9, %cst_10 {dimension_numbers = #tpu.dot_dimension_numbers<[1], [0], [0], [1], [0, 0, 1, 1], [], []>} : vector<16x32xf32>, vector<32x32xf32>, vector<16x32xf32> -> vector<16x32xf32>
    %c0_11 = arith.constant 0 : index
    %c0_12 = arith.constant 0 : index
    %11 = vector.load %arg5[%c0_11, %c0_12] : memref<1x32xf32, #tpu.memory_space<vmem>>, vector<1x32xf32>
    %12 = arith.addf %5, %8 : vector<16x32xf32>
    %13 = vector.broadcast %11 : vector<1x32xf32> to vector<16x32xf32>
    %14 = arith.addf %12, %13 : vector<16x32xf32>
    %cst_13 = arith.constant 5.000000e-01 : f32
    %15 = vector.broadcast %cst_13 : f32 to vector<16x32xf32>
    %16 = arith.mulf %15, %14 : vector<16x32xf32>
    %cst_14 = arith.constant 0.797884583 : f32
    %17 = vector.broadcast %cst_14 : f32 to vector<16x32xf32>
    %18 = arith.mulf %14, %17 : vector<16x32xf32>
    %cst_15 = arith.constant 4.471500e-02 : f32
    %19 = vector.broadcast %cst_15 : f32 to vector<16x32xf32>
    %20 = arith.mulf %19, %14 : vector<16x32xf32>
    %21 = arith.mulf %20, %14 : vector<16x32xf32>
    %cst_16 = arith.constant 1.000000e+00 : f32
    %22 = vector.broadcast %cst_16 : f32 to vector<16x32xf32>
    %23 = arith.addf %22, %21 : vector<16x32xf32>
    %24 = arith.mulf %18, %23 : vector<16x32xf32>
    %25 = math.tanh %24 : vector<16x32xf32>
    %cst_17 = arith.constant 1.000000e+00 : f32
    %26 = vector.broadcast %cst_17 : f32 to vector<16x32xf32>
    %27 = arith.addf %26, %25 : vector<16x32xf32>
    %28 = arith.mulf %16, %27 : vector<16x32xf32>
    %29 = arith.addf %5, %6 : vector<16x32xf32>
    %30 = arith.subf %29, %8 : vector<16x32xf32>
    %31 = vector.broadcast %11 : vector<1x32xf32> to vector<16x32xf32>
    %32 = arith.addf %30, %31 : vector<16x32xf32>
    %cst_18 = arith.constant 5.000000e-01 : f32
    %33 = vector.broadcast %cst_18 : f32 to vector<16x32xf32>
    %34 = arith.mulf %33, %32 : vector<16x32xf32>
    %cst_19 = arith.constant 0.797884583 : f32
    %35 = vector.broadcast %cst_19 : f32 to vector<16x32xf32>
    %36 = arith.mulf %32, %35 : vector<16x32xf32>
    %cst_20 = arith.constant 4.471500e-02 : f32
    %37 = vector.broadcast %cst_20 : f32 to vector<16x32xf32>
    %38 = arith.mulf %37, %32 : vector<16x32xf32>
    %39 = arith.mulf %38, %32 : vector<16x32xf32>
    %cst_21 = arith.constant 1.000000e+00 : f32
    %40 = vector.broadcast %cst_21 : f32 to vector<16x32xf32>
    %41 = arith.addf %40, %39 : vector<16x32xf32>
    %42 = arith.mulf %36, %41 : vector<16x32xf32>
    %43 = math.tanh %42 : vector<16x32xf32>
    %cst_22 = arith.constant 1.000000e+00 : f32
    %44 = vector.broadcast %cst_22 : f32 to vector<16x32xf32>
    %45 = arith.addf %44, %43 : vector<16x32xf32>
    %46 = arith.mulf %34, %45 : vector<16x32xf32>
    %47 = arith.addf %5, %10 : vector<16x32xf32>
    %48 = vector.broadcast %11 : vector<1x32xf32> to vector<16x32xf32>
    %49 = arith.addf %47, %48 : vector<16x32xf32>
    %cst_23 = arith.constant 5.000000e-01 : f32
    %50 = vector.broadcast %cst_23 : f32 to vector<16x32xf32>
    %51 = arith.mulf %50, %49 : vector<16x32xf32>
    %cst_24 = arith.constant 0.797884583 : f32
    %52 = vector.broadcast %cst_24 : f32 to vector<16x32xf32>
    %53 = arith.mulf %49, %52 : vector<16x32xf32>
    %cst_25 = arith.constant 4.471500e-02 : f32
    %54 = vector.broadcast %cst_25 : f32 to vector<16x32xf32>
    %55 = arith.mulf %54, %49 : vector<16x32xf32>
    %56 = arith.mulf %55, %49 : vector<16x32xf32>
    %cst_26 = arith.constant 1.000000e+00 : f32
    %57 = vector.broadcast %cst_26 : f32 to vector<16x32xf32>
    %58 = arith.addf %57, %56 : vector<16x32xf32>
    %59 = arith.mulf %53, %58 : vector<16x32xf32>
    %60 = math.tanh %59 : vector<16x32xf32>
    %cst_27 = arith.constant 1.000000e+00 : f32
    %61 = vector.broadcast %cst_27 : f32 to vector<16x32xf32>
    %62 = arith.addf %61, %60 : vector<16x32xf32>
    %63 = arith.mulf %51, %62 : vector<16x32xf32>
    %64 = tpu.concatenate %28, %46, %63 in 1 : vector<16x32xf32>, vector<16x32xf32>, vector<16x32xf32> -> vector<16x96xf32>
    %c0_28 = arith.constant 0 : index
    %c0_29 = arith.constant 0 : index
    %65 = vector.load %arg6[%c0_28, %c0_29] : memref<96x32xf32, #tpu.memory_space<vmem>>, vector<96x32xf32>
    %cst_30 = arith.constant dense<0.000000e+00> : vector<16x32xf32>
    %66 = tpu.matmul %64, %65, %cst_30 {dimension_numbers = #tpu.dot_dimension_numbers<[1], [0], [0], [1], [0, 0, 1, 1], [], []>} : vector<16x96xf32>, vector<96x32xf32>, vector<16x32xf32> -> vector<16x32xf32>
    %c0_31 = arith.constant 0 : index
    %c0_32 = arith.constant 0 : index
    %67 = vector.load %arg7[%c0_31, %c0_32] : memref<1x32xf32, #tpu.memory_space<vmem>>, vector<1x32xf32>
    %68 = vector.broadcast %67 : vector<1x32xf32> to vector<16x32xf32>
    %69 = arith.addf %66, %68 : vector<16x32xf32>
    %cst_33 = arith.constant 5.000000e-01 : f32
    %70 = vector.broadcast %cst_33 : f32 to vector<16x32xf32>
    %71 = arith.mulf %70, %69 : vector<16x32xf32>
    %cst_34 = arith.constant 0.797884583 : f32
    %72 = vector.broadcast %cst_34 : f32 to vector<16x32xf32>
    %73 = arith.mulf %69, %72 : vector<16x32xf32>
    %cst_35 = arith.constant 4.471500e-02 : f32
    %74 = vector.broadcast %cst_35 : f32 to vector<16x32xf32>
    %75 = arith.mulf %74, %69 : vector<16x32xf32>
    %76 = arith.mulf %75, %69 : vector<16x32xf32>
    %cst_36 = arith.constant 1.000000e+00 : f32
    %77 = vector.broadcast %cst_36 : f32 to vector<16x32xf32>
    %78 = arith.addf %77, %76 : vector<16x32xf32>
    %79 = arith.mulf %73, %78 : vector<16x32xf32>
    %80 = math.tanh %79 : vector<16x32xf32>
    %cst_37 = arith.constant 1.000000e+00 : f32
    %81 = vector.broadcast %cst_37 : f32 to vector<16x32xf32>
    %82 = arith.addf %81, %80 : vector<16x32xf32>
    %83 = arith.mulf %71, %82 : vector<16x32xf32>
    %c0_38 = arith.constant 0 : index
    %c0_39 = arith.constant 0 : index
    %84 = vector.load %arg8[%c0_38, %c0_39] : memref<16x32xf32, #tpu.memory_space<vmem>>, vector<16x32xf32>
    tpu.vector_store %arg8[%c0_38, %c0_39], %83 {strides = array<i32>} : memref<16x32xf32, #tpu.memory_space<vmem>>, vector<16x32xf32>,
    return
  }
  func.func @transform_0(%arg0: i32) -> (i32, i32) {
    %c0_i32 = arith.constant 0 : i32
    %c0_i32_0 = arith.constant 0 : i32
    return %arg0, %c0_i32 : i32, i32
  }
  func.func @transform_1(%arg0: i32) -> (i32, i32) {
    %c0_i32 = arith.constant 0 : i32
    %c0_i32_0 = arith.constant 0 : i32
    return %arg0, %c0_i32 : i32, i32
  }
  func.func @transform_2(%arg0: i32) -> (i32, i32) {
    %c0_i32 = arith.constant 0 : i32
    %c0_i32_0 = arith.constant 0 : i32
    %c0_i32_1 = arith.constant 0 : i32
    return %c0_i32, %c0_i32_0 : i32, i32
  }
  func.func @transform_3(%arg0: i32) -> (i32, i32) {
    %c0_i32 = arith.constant 0 : i32
    %c0_i32_0 = arith.constant 0 : i32
    %c0_i32_1 = arith.constant 0 : i32
    return %c0_i32, %c0_i32_0 : i32, i32
  }
  func.func @transform_4(%arg0: i32) -> (i32, i32) {
    %c0_i32 = arith.constant 0 : i32
    %c0_i32_0 = arith.constant 0 : i32
    %c0_i32_1 = arith.constant 0 : i32
    return %c0_i32, %c0_i32_0 : i32, i32
  }
  func.func @transform_5(%arg0: i32) -> (i32, i32) {
    %c0_i32 = arith.constant 0 : i32
    %c0_i32_0 = arith.constant 0 : i32
    %c0_i32_1 = arith.constant 0 : i32
    return %c0_i32, %c0_i32_0 : i32, i32
  }
  func.func @transform_6(%arg0: i32) -> (i32, i32) {
    %c0_i32 = arith.constant 0 : i32
    %c0_i32_0 = arith.constant 0 : i32
    %c0_i32_1 = arith.constant 0 : i32
    return %c0_i32, %c0_i32_0 : i32, i32
  }
  func.func @transform_7(%arg0: i32) -> (i32, i32) {
    %c0_i32 = arith.constant 0 : i32
    %c0_i32_0 = arith.constant 0 : i32
    return %arg0, %c0_i32 : i32, i32
  }
}

</mosaic_0001>

<llo_original>
// kernel: tpu_custom_call.1
$region0: #{tpu_custom_call.1}
  #allocation0 [shape = 'u32[]', space=smem, size = 0x4, offset = 0x4, fixed_abs, tag = 'smem constant byte address 0x4 - core index']
  #allocation1 [shape = 'u32[144,128]{1,0:T(1,128)}', space=vmem, size = 0x12000, scoped, tag = 'internal scratch']
  %s0 = inlined_call_operand.vmem [shape: f32[16,32], index: 0, kind: input, shape index: {}]
  %s1 = inlined_call_operand.vmem [shape: f32[16,32], index: 1, kind: input, shape index: {}]
  %s2 = inlined_call_operand.vmem [shape: f32[32,64], index: 2, kind: input, shape index: {}]
  %s3 = inlined_call_operand.vmem [shape: f32[32,32], index: 3, kind: input, shape index: {}]
  %s4 = inlined_call_operand.vmem [shape: f32[1,32], index: 4, kind: input, shape index: {}]
  %s5 = inlined_call_operand.vmem [shape: f32[96,32], index: 5, kind: input, shape index: {}]
  %s6 = inlined_call_operand.vmem [shape: f32[1,32], index: 6, kind: input, shape index: {}]
  %s7 = inlined_call_operand.hbm [shape: f32[16,32], index: 7, kind: output, shape index: {}]
  %s8 = sld [smem:[#allocation0]]
  $region38: #{tpu_custom_call.1} parent=0
    _
  %s10 = ssub.s32 1, %s8
  %s11 = scalar_select 0, %s10, %s8
  $region1: #{tpu_custom_call.1} parent=0
    #allocation2 [shape = 'u8[8192]{0}', space=vmem, size = 0x2000, scoped, tag = 'output window, operand 0, single buffered']
    #allocation3 [shape = 's32[1]{0}', space=sflag, size = 0x4, scoped, tag = 'scoped memory for tpu_custom_call.1']
    %12 = vsyncpa [#allocation3], 0
    // Predicated region
    $region2: #{tpu_custom_call.1} parent=1 // pred_check
      _
    $region3: #{tpu_custom_call.1} parent=1 // pred_check_branch
      %14 = sbr.rel (0) target = $region5
    $region4: #{tpu_custom_call.1} parent=1 // pred_region
      _
    $region5: #{tpu_custom_call.1} parent=1 // pred_fallthru
      _
    // Predicated region
    $region6: #{tpu_custom_call.1} parent=1 // pred_check
      _
    $region7: #{tpu_custom_call.1} parent=1 // pred_check_branch
      %16 = sbr.rel (0) target = $region9
    $region8: #{tpu_custom_call.1} parent=1 // pred_region
      _
    $region9: #{tpu_custom_call.1} parent=1 // pred_fallthru
      _
    // Predicated region
    $region10: #{tpu_custom_call.1} parent=1 // pred_check
      _
    $region11: #{tpu_custom_call.1} parent=1 // pred_check_branch
      %18 = sbr.rel (0) target = $region13
    $region12: #{tpu_custom_call.1} parent=1 // pred_region
      _
    $region13: #{tpu_custom_call.1} parent=1 // pred_fallthru
      _
    // Predicated region
    $region14: #{tpu_custom_call.1} parent=1 // pred_check
      _
    $region15: #{tpu_custom_call.1} parent=1 // pred_check_branch
      %20 = sbr.rel (0) target = $region17
    $region16: #{tpu_custom_call.1} parent=1 // pred_region
      _
    $region17: #{tpu_custom_call.1} parent=1 // pred_fallthru
      _
    // Predicated region
    $region18: #{tpu_custom_call.1} parent=1 // pred_check
      _
    $region19: #{tpu_custom_call.1} parent=1 // pred_check_branch
      %22 = sbr.rel (0) target = $region21
    $region20: #{tpu_custom_call.1} parent=1 // pred_region
      _
    $region21: #{tpu_custom_call.1} parent=1 // pred_fallthru
      _
    // Predicated region
    $region22: #{tpu_custom_call.1} parent=1 // pred_check
      _
    $region23: #{tpu_custom_call.1} parent=1 // pred_check_branch
      %24 = sbr.rel (0) target = $region25
    $region24: #{tpu_custom_call.1} parent=1 // pred_region
      _
    $region25: #{tpu_custom_call.1} parent=1 // pred_fallthru
      _
    // Predicated region
    $region26: #{tpu_custom_call.1} parent=1 // pred_check
      _
    $region27: #{tpu_custom_call.1} parent=1 // pred_check_branch
      %26 = sbr.rel (0) target = $region29
    $region28: #{tpu_custom_call.1} parent=1 // pred_region
      _
    $region29: #{tpu_custom_call.1} parent=1 // pred_fallthru
      _
    %v27 = vld [vmem:[%s0] sm:$0xff]
    %v28 = vld [vmem:[%s0 + $0x8] sm:$0xff]
    %v29 = vld [vmem:[%s1] sm:$0xff]
    %v30 = vld [vmem:[%s1 + $0x8] sm:$0xff]
    %v31 = vmul.f32 %v27, %v29
    %v32 = vmul.f32 %v28, %v30
    %v33 = vld [vmem:[%s2] sm:$0xff]
    %v34 = vld [vmem:[%s2 + $0x8] sm:$0xff]
    %v35 = vld [vmem:[%s2 + $0x10] sm:$0xff]
    %v36 = vld [vmem:[%s2 + $0x18] sm:$0xff]
    %vm37 = vcmask 261120
    %v39 = vsel %vm37, %v27, 0
    %v42 = vsel %vm37, %v28, 0
    %44 = vmatprep.subr.mxu0 0.0
    %45 = vmatpush1.msra.mxu0 0.0
    %46 = vmatprep.subr.mxu0 0.0
    %47 = vmatpush1.msra.mxu0 0.0
    %48 = vmatprep.subr.mxu0 0.0
    %49 = vmatpush1.msra.mxu0 0.0
    %50 = vmatprep.subr.mxu0 0.0
    %51 = vmatpush1.msra.mxu0 0.0
    %52 = vmatprep.subr.mxu0 0.0
    %53 = vmatpush1.msra.mxu0 0.0
    %54 = vmatprep.subr.mxu0 0.0
    %55 = vmatpush1.msra.mxu0 0.0
    %56 = vmatprep.subr.mxu0 0.0
    %57 = vmatpush1.msra.mxu0 0.0
    %58 = vmatprep.subr.mxu0 0.0
    %59 = vmatpush1.msra.mxu0 0.0
    %60 = vmatprep.subr.mxu0 0.0
    %61 = vmatpush1.msra.mxu0 0.0
    %62 = vmatprep.subr.mxu0 0.0
    %63 = vmatpush1.msra.mxu0 0.0
    %64 = vmatprep.subr.mxu0 0.0
    %65 = vmatpush1.msra.mxu0 0.0
    %66 = vmatprep.subr.mxu0 0.0
    %67 = vmatpush1.msra.mxu0 0.0
    %68 = vmatprep.subr.mxu0 0.0
    %69 = vmatpush1.msra.mxu0 %v36
    %70 = vmatprep.subr.mxu0 0.0
    %71 = vmatpush1.msra.mxu0 %v35
    %72 = vmatprep.subr.mxu0 0.0
    %73 = vmatpush1.msra.mxu0 %v34
    %74 = vmatprep.subr.mxu0 0.0
    %75 = vmatpush1.msra.mxu0 %v33
    %76 = vmatprep.subr.mxu0 0.0
    %77 = vmatpush2.msra.mxu0 0.0
    %78 = vmatprep.subr.mxu0 0.0
    %79 = vmatpush2.msra.mxu0 0.0
    %80 = vmatprep.subr.mxu0 0.0
    %81 = vmatpush2.msra.mxu0 0.0
    %82 = vmatprep.subr.mxu0 0.0
    %83 = vmatpush2.msra.mxu0 0.0
    %84 = vmatprep.subr.mxu0 0.0
    %85 = vmatpush2.msra.mxu0 0.0
    %86 = vmatprep.subr.mxu0 0.0
    %87 = vmatpush2.msra.mxu0 0.0
    %88 = vmatprep.subr.mxu0 0.0
    %89 = vmatpush2.msra.mxu0 0.0
    %90 = vmatprep.subr.mxu0 0.0
    %91 = vmatpush2.msra.mxu0 0.0
    %92 = vmatprep.subr.mxu0 0.0
    %93 = vmatpush2.msra.mxu0 0.0
    %94 = vmatprep.subr.mxu0 0.0
    %95 = vmatpush2.msra.mxu0 0.0
    %96 = vmatprep.subr.mxu0 0.0
    %97 = vmatpush2.msra.mxu0 0.0
    %98 = vmatprep.subr.mxu0 0.0
    %99 = vmatpush2.msra.mxu0 0.0
    %100 = vmatprep.subr.mxu0 0.0
    %101 = vmatpush2.msra.mxu0 0.0
    %102 = vmatprep.subr.mxu0 0.0
    %103 = vmatpush2.msra.mxu0 0.0
    %104 = vmatprep.subr.mxu0 0.0
    %105 = vmatpush2.msra.mxu0 0.0
    %106 = vmatprep.subr.mxu0 0.0
    %107 = vmatpush2.msra.mxu0 0.0
    %108 = vmatprep.mubr.f32.mxu0 0.0
    %109 = vmatmul.mubr.f32.gmra.mxu0 %v39
    %v110 = vpop.f32.mrf.mxu0
    %v111 = vadd.f32 0.0, %v110
    %v112 = vpop.f32.mrf.mxu0
    %113 = vmatprep.mubr.f32.mxu0 0.0
    %114 = vmatmul.mubr.f32.gmra.mxu0 %v42
    %v115 = vpop.f32.mrf.mxu0
    %v116 = vadd.f32 0.0, %v115
    %v117 = vpop.f32.mrf.mxu0
    %118 = vdwg.mxu0
    %v119 = vld [vmem:[%s3] sm:$0xff]
    %v120 = vld [vmem:[%s3 + $0x8] sm:$0xff]
    %v121 = vld [vmem:[%s3 + $0x10] sm:$0xff]
    %v122 = vld [vmem:[%s3 + $0x18] sm:$0xff]
    %v124 = vsel %vm37, %v29, 0
    %v127 = vsel %vm37, %v30, 0
    %129 = vmatprep.subr.mxu0 0.0
    %130 = vmatpush1.msra.mxu0 0.0
    %131 = vmatprep.subr.mxu0 0.0
    %132 = vmatpush1.msra.mxu0 0.0
    %133 = vmatprep.subr.mxu0 0.0
    %134 = vmatpush1.msra.mxu0 0.0
    %135 = vmatprep.subr.mxu0 0.0
    %136 = vmatpush1.msra.mxu0 0.0
    %137 = vmatprep.subr.mxu0 0.0
    %138 = vmatpush1.msra.mxu0 0.0
    %139 = vmatprep.subr.mxu0 0.0
    %140 = vmatpush1.msra.mxu0 0.0
    %141 = vmatprep.subr.mxu0 0.0
    %142 = vmatpush1.msra.mxu0 0.0
    %143 = vmatprep.subr.mxu0 0.0
    %144 = vmatpush1.msra.mxu0 0.0
    %145 = vmatprep.subr.mxu0 0.0
    %146 = vmatpush1.msra.mxu0 0.0
    %147 = vmatprep.subr.mxu0 0.0
    %148 = vmatpush1.msra.mxu0 0.0
    %149 = vmatprep.subr.mxu0 0.0
    %150 = vmatpush1.msra.mxu0 0.0
    %151 = vmatprep.subr.mxu0 0.0
    %152 = vmatpush1.msra.mxu0 0.0
    %153 = vmatprep.subr.mxu0 0.0
    %154 = vmatpush1.msra.mxu0 %v122
    %155 = vmatprep.subr.mxu0 0.0
    %156 = vmatpush1.msra.mxu0 %v121
    %157 = vmatprep.subr.mxu0 0.0
    %158 = vmatpush1.msra.mxu0 %v120
    %159 = vmatprep.subr.mxu0 0.0
    %160 = vmatpush1.msra.mxu0 %v119
    %161 = vmatprep.subr.mxu0 0.0
    %162 = vmatpush2.msra.mxu0 0.0
    %163 = vmatprep.subr.mxu0 0.0
    %164 = vmatpush2.msra.mxu0 0.0
    %165 = vmatprep.subr.mxu0 0.0
    %166 = vmatpush2.msra.mxu0 0.0
    %167 = vmatprep.subr.mxu0 0.0
    %168 = vmatpush2.msra.mxu0 0.0
    %169 = vmatprep.subr.mxu0 0.0
    %170 = vmatpush2.msra.mxu0 0.0
    %171 = vmatprep.subr.mxu0 0.0
    %172 = vmatpush2.msra.mxu0 0.0
    %173 = vmatprep.subr.mxu0 0.0
    %174 = vmatpush2.msra.mxu0 0.0
    %175 = vmatprep.subr.mxu0 0.0
    %176 = vmatpush2.msra.mxu0 0.0
    %177 = vmatprep.subr.mxu0 0.0
    %178 = vmatpush2.msra.mxu0 0.0
    %179 = vmatprep.subr.mxu0 0.0
    %180 = vmatpush2.msra.mxu0 0.0
    %181 = vmatprep.subr.mxu0 0.0
    %182 = vmatpush2.msra.mxu0 0.0
    %183 = vmatprep.subr.mxu0 0.0
    %184 = vmatpush2.msra.mxu0 0.0
    %185 = vmatprep.subr.mxu0 0.0
    %186 = vmatpush2.msra.mxu0 0.0
    %187 = vmatprep.subr.mxu0 0.0
    %188 = vmatpush2.msra.mxu0 0.0
    %189 = vmatprep.subr.mxu0 0.0
    %190 = vmatpush2.msra.mxu0 0.0
    %191 = vmatprep.subr.mxu0 0.0
    %192 = vmatpush2.msra.mxu0 0.0
    %193 = vmatprep.mubr.f32.mxu0 0.0
    %194 = vmatmul.mubr.f32.gmra.mxu0 %v124
    %v195 = vpop.f32.mrf.mxu0
    %v196 = vadd.f32 0.0, %v195
    %v197 = vpop.f32.mrf.mxu0
    %198 = vmatprep.mubr.f32.mxu0 0.0
    %199 = vmatmul.mubr.f32.gmra.mxu0 %v127
    %v200 = vpop.f32.mrf.mxu0
    %v201 = vadd.f32 0.0, %v200
    %v202 = vpop.f32.mrf.mxu0
    %203 = vdwg.mxu0
    %v205 = vsel %vm37, %v31, 0
    %v208 = vsel %vm37, %v32, 0
    %210 = vmatprep.subr.mxu0 0.0
    %211 = vmatpush1.msra.mxu0 0.0
    %212 = vmatprep.subr.mxu0 0.0
    %213 = vmatpush1.msra.mxu0 0.0
    %214 = vmatprep.subr.mxu0 0.0
    %215 = vmatpush1.msra.mxu0 0.0
    %216 = vmatprep.subr.mxu0 0.0
    %217 = vmatpush1.msra.mxu0 0.0
    %218 = vmatprep.subr.mxu0 0.0
    %219 = vmatpush1.msra.mxu0 0.0
    %220 = vmatprep.subr.mxu0 0.0
    %221 = vmatpush1.msra.mxu0 0.0
    %222 = vmatprep.subr.mxu0 0.0
    %223 = vmatpush1.msra.mxu0 0.0
    %224 = vmatprep.subr.mxu0 0.0
    %225 = vmatpush1.msra.mxu0 0.0
    %226 = vmatprep.subr.mxu0 0.0
    %227 = vmatpush1.msra.mxu0 0.0
    %228 = vmatprep.subr.mxu0 0.0
    %229 = vmatpush1.msra.mxu0 0.0
    %230 = vmatprep.subr.mxu0 0.0
    %231 = vmatpush1.msra.mxu0 0.0
    %232 = vmatprep.subr.mxu0 0.0
    %233 = vmatpush1.msra.mxu0 0.0
    %234 = vmatprep.subr.mxu0 0.0
    %235 = vmatpush1.msra.mxu0 %v122
    %236 = vmatprep.subr.mxu0 0.0
    %237 = vmatpush1.msra.mxu0 %v121
    %238 = vmatprep.subr.mxu0 0.0
    %239 = vmatpush1.msra.mxu0 %v120
    %240 = vmatprep.subr.mxu0 0.0
    %241 = vmatpush1.msra.mxu0 %v119
    %242 = vmatprep.subr.mxu0 0.0
    %243 = vmatpush2.msra.mxu0 0.0
    %244 = vmatprep.subr.mxu0 0.0
    %245 = vmatpush2.msra.mxu0 0.0
    %246 = vmatprep.subr.mxu0 0.0
    %247 = vmatpush2.msra.mxu0 0.0
    %248 = vmatprep.subr.mxu0 0.0
    %249 = vmatpush2.msra.mxu0 0.0
    %250 = vmatprep.subr.mxu0 0.0
    %251 = vmatpush2.msra.mxu0 0.0
    %252 = vmatprep.subr.mxu0 0.0
    %253 = vmatpush2.msra.mxu0 0.0
    %254 = vmatprep.subr.mxu0 0.0
    %255 = vmatpush2.msra.mxu0 0.0
    %256 = vmatprep.subr.mxu0 0.0
    %257 = vmatpush2.msra.mxu0 0.0
    %258 = vmatprep.subr.mxu0 0.0
    %259 = vmatpush2.msra.mxu0 0.0
    %260 = vmatprep.subr.mxu0 0.0
    %261 = vmatpush2.msra.mxu0 0.0
    %262 = vmatprep.subr.mxu0 0.0
    %263 = vmatpush2.msra.mxu0 0.0
    %264 = vmatprep.subr.mxu0 0.0
    %265 = vmatpush2.msra.mxu0 0.0
    %266 = vmatprep.subr.mxu0 0.0
    %267 = vmatpush2.msra.mxu0 0.0
    %268 = vmatprep.subr.mxu0 0.0
    %269 = vmatpush2.msra.mxu0 0.0
    %270 = vmatprep.subr.mxu0 0.0
    %271 = vmatpush2.msra.mxu0 0.0
    %272 = vmatprep.subr.mxu0 0.0
    %273 = vmatpush2.msra.mxu0 0.0
    %274 = vmatprep.mubr.f32.mxu0 0.0
    %275 = vmatmul.mubr.f32.gmra.mxu0 %v205
    %v276 = vpop.f32.mrf.mxu0
    %v277 = vadd.f32 0.0, %v276
    %v278 = vpop.f32.mrf.mxu0
    %279 = vmatprep.mubr.f32.mxu0 0.0
    %280 = vmatmul.mubr.f32.gmra.mxu0 %v208
    %v281 = vpop.f32.mrf.mxu0
    %v282 = vadd.f32 0.0, %v281
    %v283 = vpop.f32.mrf.mxu0
    %284 = vdwg.mxu0
    %v285 = vld [vmem:[%s4] sm:$0x1]
    %v286 = vadd.f32 %v111, %v196
    %v287 = vadd.f32 %v116, %v201
    %v289 = vlaneseq
    %v290 = vshrl.u32 %v289, 7
    %v291 = vsub.s32 0, %v290
    %v292 = vrot.slane %v285, %v291
    %v294 = vadd.f32 %v286, %v292
    %v295 = vadd.f32 %v287, %v292
    %v296 = vmul.f32 %v294, 0.5
    %v297 = vmul.f32 %v295, 0.5
    %v298 = vmul.f32 %v294, 0.7978846
    %v299 = vmul.f32 %v295, 0.7978846
    %v300 = vmul.f32 %v294, 0.044715
    %v301 = vmul.f32 %v295, 0.044715
    %v302 = vmul.f32 %v300, %v294
    %v303 = vmul.f32 %v301, %v295
    %v304 = vadd.f32 %v302, 1.0
    %v305 = vadd.f32 %v303, 1.0
    %v306 = vmul.f32 %v298, %v304
    %v307 = vmul.f32 %v299, %v305
    %v308 = vtanh.pop %v306
    %v309 = vtanh.pop %v307
    %v310 = vadd.f32 %v308, 1.0
    %v311 = vadd.f32 %v309, 1.0
    %v312 = vmul.f32 %v296, %v310
    %v313 = vmul.f32 %v297, %v311
    %316 = vrot.lane.b32.xlu0 %v111, 96
    %v317 = vpop.permute.xlu0 %316
    %318 = vrot.lane.b32.xlu0 %v116, 96
    %v319 = vpop.permute.xlu0 %318
    %v322 = vadd.f32 %v111, %v317
    %v323 = vadd.f32 %v116, %v319
    %v324 = vsub.f32 %v322, %v196
    %v325 = vsub.f32 %v323, %v201
    %v326 = vadd.f32 %v324, %v292
    %v327 = vadd.f32 %v325, %v292
    %v328 = vmul.f32 %v326, 0.5
    %v329 = vmul.f32 %v327, 0.5
    %v330 = vmul.f32 %v326, 0.7978846
    %v331 = vmul.f32 %v327, 0.7978846
    %v332 = vmul.f32 %v326, 0.044715
    %v333 = vmul.f32 %v327, 0.044715
    %v334 = vmul.f32 %v332, %v326
    %v335 = vmul.f32 %v333, %v327
    %v336 = vadd.f32 %v334, 1.0
    %v337 = vadd.f32 %v335, 1.0
    %v338 = vmul.f32 %v330, %v336
    %v339 = vmul.f32 %v331, %v337
    %v340 = vtanh.pop %v338
    %v341 = vtanh.pop %v339
    %v342 = vadd.f32 %v340, 1.0
    %v343 = vadd.f32 %v341, 1.0
    %v344 = vmul.f32 %v328, %v342
    %v345 = vmul.f32 %v329, %v343
    %v346 = vadd.f32 %v111, %v277
    %v347 = vadd.f32 %v116, %v282
    %v348 = vadd.f32 %v346, %v292
    %v349 = vadd.f32 %v347, %v292
    %v350 = vmul.f32 %v348, 0.5
    %v351 = vmul.f32 %v349, 0.5
    %v352 = vmul.f32 %v348, 0.7978846
    %v353 = vmul.f32 %v349, 0.7978846
    %v354 = vmul.f32 %v348, 0.044715
    %v355 = vmul.f32 %v349, 0.044715
    %v356 = vmul.f32 %v354, %v348
    %v357 = vmul.f32 %v355, %v349
    %v358 = vadd.f32 %v356, 1.0
    %v359 = vadd.f32 %v357, 1.0
    %v360 = vmul.f32 %v352, %v358
    %v361 = vmul.f32 %v353, %v359
    %v362 = vtanh.pop %v360
    %v363 = vtanh.pop %v361
    %v364 = vadd.f32 %v362, 1.0
    %v365 = vadd.f32 %v363, 1.0
    %v366 = vmul.f32 %v350, %v364
    %v367 = vmul.f32 %v351, %v365
    %370 = vrot.lane.b32.xlu0 %v344, 32
    %v371 = vpop.permute.xlu0 %370
    %372 = vrot.lane.b32.xlu0 %v345, 32
    %v373 = vpop.permute.xlu0 %372
    %378 = vrot.lane.b32.xlu0 %v366, 64
    %v379 = vpop.permute.xlu0 %378
    %380 = vrot.lane.b32.xlu0 %v367, 64
    %v381 = vpop.permute.xlu0 %380
    %v384 = vsel %vm37, %v312, %v371
    %v385 = vsel %vm37, %v313, %v373
    %vm386 = vcmask 523264
    %v387 = vsel %vm386, %v384, %v379
    %v388 = vsel %vm386, %v385, %v381
    %v389 = vld [vmem:[%s5] sm:$0xff]
    %v390 = vld [vmem:[%s5 + $0x8] sm:$0xff]
    %v391 = vld [vmem:[%s5 + $0x10] sm:$0xff]
    %v392 = vld [vmem:[%s5 + $0x18] sm:$0xff]
    %v393 = vld [vmem:[%s5 + $0x20] sm:$0xff]
    %v394 = vld [vmem:[%s5 + $0x28] sm:$0xff]
    %v395 = vld [vmem:[%s5 + $0x30] sm:$0xff]
    %v396 = vld [vmem:[%s5 + $0x38] sm:$0xff]
    %v397 = vld [vmem:[%s5 + $0x40] sm:$0xff]
    %v398 = vld [vmem:[%s5 + $0x48] sm:$0xff]
    %v399 = vld [vmem:[%s5 + $0x50] sm:$0xff]
    %v400 = vld [vmem:[%s5 + $0x58] sm:$0xff]
    %v401 = vld [vmem:[%s6] sm:$0x1]
    %v403 = vlaneseq
    %v404 = vshrl.u32 %v403, 7
    %v405 = vsub.s32 0, %v404
    %v406 = vrot.slane %v401, %v405
    %vm408 = vcmask 785408
    %v410 = vsel %vm408, %v387, 0
    %v413 = vsel %vm408, %v388, 0
    %415 = vmatprep.subr.mxu0 0.0
    %416 = vmatpush1.msra.mxu0 0.0
    %417 = vmatprep.subr.mxu0 0.0
    %418 = vmatpush1.msra.mxu0 0.0
    %419 = vmatprep.subr.mxu0 0.0
    %420 = vmatpush1.msra.mxu0 0.0
    %421 = vmatprep.subr.mxu0 0.0
    %422 = vmatpush1.msra.mxu0 0.0
    %423 = vmatprep.subr.mxu0 0.0
    %424 = vmatpush1.msra.mxu0 %v400
    %425 = vmatprep.subr.mxu0 0.0
    %426 = vmatpush1.msra.mxu0 %v399
    %427 = vmatprep.subr.mxu0 0.0
    %428 = vmatpush1.msra.mxu0 %v398
    %429 = vmatprep.subr.mxu0 0.0
    %430 = vmatpush1.msra.mxu0 %v397
    %431 = vmatprep.subr.mxu0 0.0
    %432 = vmatpush1.msra.mxu0 %v396
    %433 = vmatprep.subr.mxu0 0.0
    %434 = vmatpush1.msra.mxu0 %v395
    %435 = vmatprep.subr.mxu0 0.0
    %436 = vmatpush1.msra.mxu0 %v394
    %437 = vmatprep.subr.mxu0 0.0
    %438 = vmatpush1.msra.mxu0 %v393
    %439 = vmatprep.subr.mxu0 0.0
    %440 = vmatpush1.msra.mxu0 %v392
    %441 = vmatprep.subr.mxu0 0.0
    %442 = vmatpush1.msra.mxu0 %v391
    %443 = vmatprep.subr.mxu0 0.0
    %444 = vmatpush1.msra.mxu0 %v390
    %445 = vmatprep.subr.mxu0 0.0
    %446 = vmatpush1.msra.mxu0 %v389
    %447 = vmatprep.subr.mxu0 0.0
    %448 = vmatpush2.msra.mxu0 0.0
    %449 = vmatprep.subr.mxu0 0.0
    %450 = vmatpush2.msra.mxu0 0.0
    %451 = vmatprep.subr.mxu0 0.0
    %452 = vmatpush2.msra.mxu0 0.0
    %453 = vmatprep.subr.mxu0 0.0
    %454 = vmatpush2.msra.mxu0 0.0
    %455 = vmatprep.subr.mxu0 0.0
    %456 = vmatpush2.msra.mxu0 0.0
    %457 = vmatprep.subr.mxu0 0.0
    %458 = vmatpush2.msra.mxu0 0.0
    %459 = vmatprep.subr.mxu0 0.0
    %460 = vmatpush2.msra.mxu0 0.0
    %461 = vmatprep.subr.mxu0 0.0
    %462 = vmatpush2.msra.mxu0 0.0
    %463 = vmatprep.subr.mxu0 0.0
    %464 = vmatpush2.msra.mxu0 0.0
    %465 = vmatprep.subr.mxu0 0.0
    %466 = vmatpush2.msra.mxu0 0.0
    %467 = vmatprep.subr.mxu0 0.0
    %468 = vmatpush2.msra.mxu0 0.0
    %469 = vmatprep.subr.mxu0 0.0
    %470 = vmatpush2.msra.mxu0 0.0
    %471 = vmatprep.subr.mxu0 0.0
    %472 = vmatpush2.msra.mxu0 0.0
    %473 = vmatprep.subr.mxu0 0.0
    %474 = vmatpush2.msra.mxu0 0.0
    %475 = vmatprep.subr.mxu0 0.0
    %476 = vmatpush2.msra.mxu0 0.0
    %477 = vmatprep.subr.mxu0 0.0
    %478 = vmatpush2.msra.mxu0 0.0
    %479 = vmatprep.mubr.f32.mxu0 0.0
    %480 = vmatmul.mubr.f32.gmra.mxu0 %v410
    %v481 = vpop.f32.mrf.mxu0
    %v482 = vadd.f32 %v406, %v481
    %v483 = vpop.f32.mrf.mxu0
    %484 = vmatprep.mubr.f32.mxu0 0.0
    %485 = vmatmul.mubr.f32.gmra.mxu0 %v413
    %v486 = vpop.f32.mrf.mxu0
    %v487 = vadd.f32 %v406, %v486
    %v488 = vpop.f32.mrf.mxu0
    %489 = vdwg.mxu0
    %v490 = vmul.f32 %v482, 0.5
    %v491 = vmul.f32 %v487, 0.5
    %v492 = vmul.f32 %v482, 0.7978846
    %v493 = vmul.f32 %v487, 0.7978846
    %v494 = vmul.f32 %v482, 0.044715
    %v495 = vmul.f32 %v487, 0.044715
    %v496 = vmul.f32 %v494, %v482
    %v497 = vmul.f32 %v495, %v487
    %v498 = vadd.f32 %v496, 1.0
    %v499 = vadd.f32 %v497, 1.0
    %v500 = vmul.f32 %v492, %v498
    %v501 = vmul.f32 %v493, %v499
    %v502 = vtanh.pop %v500
    %v503 = vtanh.pop %v501
    %v504 = vadd.f32 %v502, 1.0
    %v505 = vadd.f32 %v503, 1.0
    %v506 = vmul.f32 %v490, %v504
    %v507 = vmul.f32 %v491, %v505
    %508 = vst.msk [vmem:[#allocation2] sm:$0xff] %vm37, %v506
    %509 = vst.msk [vmem:[#allocation2 + $0x8] sm:$0xff] %vm37, %v507
    // Predicated region
    $region30: #{tpu_custom_call.1} parent=1 // pred_check
      _
    $region31: #{tpu_custom_call.1} parent=1 // pred_check_branch
      %511 = sbr.rel (0) target = $region33
    $region32: #{tpu_custom_call.1} parent=1 // pred_region
      %s513 = ssub.s32 256, 256
      %514 = vsyncadd [#allocation3], %s513
      %s515 = sshll.u32 [#allocation2], 4
      %s516 = int_to_ptr.vmem [resolvable:$true] %s515
      %521 = dma.vmem_to_hbm [thread:$0]  %s516, 256, %s7, [#allocation3], 128, 128, 8
    $region33: #{tpu_custom_call.1} parent=1 // pred_fallthru
      _
    // Predicated region
    $region34: #{tpu_custom_call.1} parent=1 // pred_check
      _
    $region35: #{tpu_custom_call.1} parent=1 // pred_check_branch
      %523 = sbr.rel (0) target = $region37
    $region36: #{tpu_custom_call.1} parent=1 // pred_region
      %524 = dma.done [#allocation3], 256
    $region37: #{tpu_custom_call.1} parent=1 // pred_fallthru
      _
    %525 = vsyncpa [#allocation3], 1

</llo_original>
